<compile_context>
chip_gen: v7x
topology: tpu7x:2x2x1
jax: 0.10.0
libtpu: 0.0.40
codegen_flags: <defaults>
</compile_context>

<pallas_src>
import math

import jax
import jax.numpy as jnp
from jax.experimental import pallas as pl
from jax.experimental.pallas import tpu as pltpu


def _build_pe_table(embedding_dims: int, max_len: int = 5000,
                    dtype=jnp.float32) -> jnp.ndarray:
    """Sinusoidal positional-encoding buffer matching the PyTorch __init__
    (pe[:, 0, :], shape [max_len, embedding_dims])."""
    position = jnp.arange(max_len, dtype=jnp.float32)[:, None]            # [L, 1]
    div_term = jnp.exp(
        jnp.arange(0, embedding_dims, 2, dtype=jnp.float32)
        * (-math.log(10000.0) / embedding_dims)
    )                                                                     # [D/2]
    pe = jnp.zeros((max_len, embedding_dims), dtype=jnp.float32)
    pe = pe.at[:, 0::2].set(jnp.sin(position * div_term))
    pe = pe.at[:, 1::2].set(jnp.cos(position * div_term))
    return pe.astype(dtype)


def _pe_add_kernel(x_ref, pe_ref, o_ref):
    # x_ref / o_ref: (ts, tb, D) blocks; pe_ref: (ts, 1, D) block, same dtype.
    # The size-1 batch dim broadcasts in-kernel (sublane broadcast) so the
    # [seq, batch, D] PE is never written to / re-read from HBM.
    o_ref[...] = x_ref[...] + pe_ref[...]


def _choose_tiles(seq_len: int, batch: int, embed_dim: int, itemsize: int,
                  target_block_bytes: int = 4 << 20,
                  min_seq_steps: int = 8) -> tuple[int, int]:
    """Pick (seq_tile, batch_tile):
      - ~target_block_bytes per big block (amortizes ~0.35 us/step overhead),
      - batch tile in multiples of 8 (second-minor layout) so huge batch*embed
        shapes never blow VMEM,
      - enough sequence steps for pipelining + v7x 2-TC sharding when the
        sequence is long enough."""
    sublane = max(8, 32 // max(itemsize, 1))        # 8 f32 / 16 bf16 / 32 int8
    row_bytes = batch * embed_dim * itemsize

    # Batch (second-minor) tile: full batch unless even a minimum-height block
    # would exceed the per-stream budget.
    if batch <= 8 or sublane * row_bytes <= target_block_bytes:
        tb = batch
    else:
        tb = (target_block_bytes // (sublane * embed_dim * itemsize)) // 8 * 8
        tb = int(min(max(tb, 8), batch))

    # Sequence tile: as many sublane-multiple rows as fit the budget ...
    block_row_bytes = max(tb * embed_dim * itemsize, 1)
    ts = (target_block_bytes // block_row_bytes) // sublane * sublane
    ts = int(max(ts, sublane))
    # ... but small enough to keep >= min_seq_steps grid steps when possible
    # (megacore sharding on v7x; near-neutral on v5e/v6e).
    if seq_len >= min_seq_steps * sublane:
        ts = min(ts, max(sublane, (seq_len // min_seq_steps) // sublane * sublane))
    if ts >= seq_len:
        ts = seq_len                                 # single full-extent block
    return ts, tb


def _positional_encoding_pallas(x: jnp.ndarray, pe_table: jnp.ndarray) -> jnp.ndarray:
    seq_len, batch, embed_dim = x.shape
    dtype = x.dtype
    itemsize = jnp.dtype(dtype).itemsize

    # PE stays small: [seq_len, 1, embed_dim], cast once.
    pe3 = pe_table[:seq_len].astype(dtype)[:, None, :]

    ts, tb = _choose_tiles(seq_len, batch, embed_dim, itemsize)
    grid = (pl.cdiv(seq_len, ts), pl.cdiv(batch, tb))

    x_spec = pl.BlockSpec((ts, tb, embed_dim), lambda i, j: (i, j, 0))
    pe_spec = pl.BlockSpec((ts, 1, embed_dim), lambda i, j: (i, 0, 0))

    # VMEM budget: 2 big streams (x in, out) double-buffered + tiny PE buffers.
    block_bytes = ts * tb * embed_dim * itemsize
    pe_block_bytes = ts * embed_dim * itemsize
    footprint = 2 * 2 * block_bytes + 2 * pe_block_bytes
    vmem_limit = int(min(max(footprint + (8 << 20), 32 << 20), 48 << 20))

    x_bytes = seq_len * batch * embed_dim * itemsize
    pe_bytes = seq_len * embed_dim * itemsize

    return pl.pallas_call(
        _pe_add_kernel,
        out_shape=jax.ShapeDtypeStruct((seq_len, batch, embed_dim), dtype),
        grid=grid,
        in_specs=[x_spec, pe_spec],
        out_specs=x_spec,
        input_output_aliases={0: 0},                 # x is consumed by the add
        compiler_params=pltpu.CompilerParams(
            dimension_semantics=("parallel", "parallel"),
            vmem_limit_bytes=vmem_limit,
        ),
        cost_estimate=pl.CostEstimate(
            flops=seq_len * batch * embed_dim,
            transcendentals=0,
            bytes_accessed=2 * x_bytes + pe_bytes,   # x in + out + small pe
        ),
    )(x, pe3)


def positional_encoding_forward(x: jnp.ndarray, pe_table: jnp.ndarray,
                                use_pallas: bool | None = None) -> jnp.ndarray:
    """x: [seq_len, batch, embed_dim] -> x + pe[:seq_len] (broadcast over batch)."""
    seq_len = x.shape[0]
    if seq_len > pe_table.shape[0]:
        raise ValueError(
            f"seq_len={seq_len} exceeds positional-encoding max_len={pe_table.shape[0]}"
        )
    if use_pallas is None:
        # Tiny problems: pallas_call / custom-call overhead dwarfs the ~KB of
        # work; let XLA emit a fused elementwise add instead.
        use_pallas = x.size * jnp.dtype(x.dtype).itemsize >= (1 << 20)
    if not use_pallas:
        return x + pe_table[:seq_len][:, None, :].astype(x.dtype)
    return _positional_encoding_pallas(x, pe_table)


if __name__ == "__main__":
    key = jax.random.PRNGKey(0)
    seq_len, batch, embed_dim = 8, 2, 32

    x = jax.random.normal(key, (seq_len, batch, embed_dim), dtype=jnp.float32)
    pe_table = _build_pe_table(embed_dim, max_len=5000)

    # Pure-JAX reference: x + pe[:seq_len] broadcast over batch.
    ref = x + pe_table[:seq_len][:, None, :]

    # Force the Pallas path so the kernel itself executes at the demo shape.
    out = positional_encoding_forward(x, pe_table, use_pallas=True)
    out = jax.block_until_ready(out)

    assert out.shape == (seq_len, batch, embed_dim)
    assert jnp.allclose(out, ref, atol=1e-6, rtol=1e-6), "pallas path mismatch"

    # Auto-dispatch path (falls back to fused XLA for this tiny shape) agrees.
    out_auto = jax.block_until_ready(positional_encoding_forward(x, pe_table))
    assert jnp.allclose(out_auto, ref, atol=1e-6, rtol=1e-6), "auto path mismatch"

    print("KERNEL_OK")
</pallas_src>

<mosaic_0001>
module attributes {stable_mosaic.version = 11 : i64} {
  func.func @_pe_add_kernel(%arg0: i32, %arg1: i32, %arg2: memref<8x2x32xf32, #tpu.memory_space<vmem>>, %arg3: memref<8x1x32xf32, #tpu.memory_space<vmem>>, %arg4: memref<8x2x32xf32, #tpu.memory_space<vmem>>) attributes {dimension_semantics = [#tpu.dimension_semantics<parallel>, #tpu.dimension_semantics<parallel>], iteration_bounds = array<i64: 1, 1>, scalar_prefetch = 0 : i64, scratch_operands = 0 : i64, tpu.core_type = #tpu.core_type<tc>, window_params = [{transform_indices = @transform_0, window_bounds = array<i64: 8, 2, 32>}, {transform_indices = @transform_1, window_bounds = array<i64: 8, 1, 32>}, {transform_indices = @transform_2, window_bounds = array<i64: 8, 2, 32>}]} {
    %c0 = arith.constant 0 : index
    %c0_0 = arith.constant 0 : index
    %c0_1 = arith.constant 0 : index
    %0 = vector.load %arg2[%c0, %c0_0, %c0_1] : memref<8x2x32xf32, #tpu.memory_space<vmem>>, vector<8x2x32xf32>
    %c0_2 = arith.constant 0 : index
    %c0_3 = arith.constant 0 : index
    %c0_4 = arith.constant 0 : index
    %1 = vector.load %arg3[%c0_2, %c0_3, %c0_4] : memref<8x1x32xf32, #tpu.memory_space<vmem>>, vector<8x1x32xf32>
    %2 = vector.broadcast %1 : vector<8x1x32xf32> to vector<8x2x32xf32>
    %3 = arith.addf %0, %2 : vector<8x2x32xf32>
    %c0_5 = arith.constant 0 : index
    %c0_6 = arith.constant 0 : index
    %c0_7 = arith.constant 0 : index
    %4 = vector.load %arg4[%c0_5, %c0_6, %c0_7] : memref<8x2x32xf32, #tpu.memory_space<vmem>>, vector<8x2x32xf32>
    tpu.vector_store %arg4[%c0_5, %c0_6, %c0_7], %3 {strides = array<i32>} : memref<8x2x32xf32, #tpu.memory_space<vmem>>, vector<8x2x32xf32>,
    return
  }
  func.func @transform_0(%arg0: i32, %arg1: i32) -> (i32, i32, i32) {
    %c0_i32 = arith.constant 0 : i32
    %c0_i32_0 = arith.constant 0 : i32
    return %arg0, %arg1, %c0_i32 : i32, i32, i32
  }
  func.func @transform_1(%arg0: i32, %arg1: i32) -> (i32, i32, i32) {
    %c0_i32 = arith.constant 0 : i32
    %c0_i32_0 = arith.constant 0 : i32
    %c0_i32_1 = arith.constant 0 : i32
    return %arg0, %c0_i32, %c0_i32_0 : i32, i32, i32
  }
  func.func @transform_2(%arg0: i32, %arg1: i32) -> (i32, i32, i32) {
    %c0_i32 = arith.constant 0 : i32
    %c0_i32_0 = arith.constant 0 : i32
    return %arg0, %arg1, %c0_i32 : i32, i32, i32
  }
}

</mosaic_0001>

<llo_original>
// kernel: tpu_custom_call.1
$region0: #{tpu_custom_call.1}
  #allocation0 [shape = 'u32[]', space=smem, size = 0x4, offset = 0x4, fixed_abs, tag = 'smem constant byte address 0x4 - core index']
  #allocation1 [shape = 'u32[144,128]{1,0:T(1,128)}', space=vmem, size = 0x12000, scoped, tag = 'internal scratch']
  %s0 = inlined_call_operand.hbm [shape: f32[8,2,32], index: 0, kind: input, shape index: {}, may-alias: {0,2}]
  %s1 = inlined_call_operand.vmem [shape: f32[8,1,32], index: 1, kind: input, shape index: {}]
  %s2 = inlined_call_operand.hbm [shape: f32[8,2,32], index: 2, kind: output, shape index: {}, may-alias: {0,2}]
  %s3 = sld [smem:[#allocation0]]
  $region22: #{tpu_custom_call.1} parent=0
    _
  %s5 = ssub.s32 1, %s3
  %s6 = scalar_select 0, %s5, %s3
  $region1: #{tpu_custom_call.1} parent=0
    #allocation2 [shape = 'u8[8192]{0}', space=vmem, size = 0x2000, scoped, tag = 'input window, operand 0, single buffered']
    #allocation3 [shape = 's32[1]{0}', space=sflag, size = 0x4, scoped, tag = 'scoped memory for tpu_custom_call.1']
    #allocation4 [shape = 's32[1]{0}', space=sflag, size = 0x4, scoped, tag = 'scoped memory for tpu_custom_call.1']
    #allocation5 [shape = 'u8[8192]{0}', space=vmem, size = 0x2000, scoped, tag = 'output window, operand 0, single buffered']
    %7 = vsyncpa [#allocation3], 0
    %8 = vsyncpa [#allocation4], 0
    // Predicated region
    $region2: #{tpu_custom_call.1} parent=1 // pred_check
      _
    $region3: #{tpu_custom_call.1} parent=1 // pred_check_branch
      %10 = sbr.rel (0) target = $region5
    $region4: #{tpu_custom_call.1} parent=1 // pred_region
      %s12 = ssub.s32 256, 256
      %13 = vsyncadd [#allocation3], %s12
      %s14 = sshll.u32 [#allocation2], 4
      %s15 = int_to_ptr.vmem [resolvable:$true] %s14
      %20 = dma.hbm_to_vmem [thread:$0]  %s0, 256, %s15, [#allocation3], 32, 32, 2
    $region5: #{tpu_custom_call.1} parent=1 // pred_fallthru
      _
    // Predicated region
    $region6: #{tpu_custom_call.1} parent=1 // pred_check
      _
    $region7: #{tpu_custom_call.1} parent=1 // pred_check_branch
      %22 = sbr.rel (0) target = $region9
    $region8: #{tpu_custom_call.1} parent=1 // pred_region
      _
    $region9: #{tpu_custom_call.1} parent=1 // pred_fallthru
      _
    // Predicated region
    $region10: #{tpu_custom_call.1} parent=1 // pred_check
      _
    $region11: #{tpu_custom_call.1} parent=1 // pred_check_branch
      %24 = sbr.rel (0) target = $region13
    $region12: #{tpu_custom_call.1} parent=1 // pred_region
      %25 = dma.done [#allocation3], 256
    $region13: #{tpu_custom_call.1} parent=1 // pred_fallthru
      _
    %v26 = vld [vmem:[#allocation2] sm:$0x3]
    %v27 = vld [vmem:[#allocation2 + $0x2] sm:$0x3]
    %v28 = vld [vmem:[#allocation2 + $0x4] sm:$0x3]
    %v29 = vld [vmem:[#allocation2 + $0x6] sm:$0x3]
    %v30 = vld [vmem:[#allocation2 + $0x8] sm:$0x3]
    %v31 = vld [vmem:[#allocation2 + $0xa] sm:$0x3]
    %v32 = vld [vmem:[#allocation2 + $0xc] sm:$0x3]
    %v33 = vld [vmem:[#allocation2 + $0xe] sm:$0x3]
    %v34 = vld [vmem:[%s1] sm:$0x1]
    %v35 = vld [vmem:[%s1 + $0x1] sm:$0x1]
    %v36 = vld [vmem:[%s1 + $0x2] sm:$0x1]
    %v37 = vld [vmem:[%s1 + $0x3] sm:$0x1]
    %v38 = vld [vmem:[%s1 + $0x4] sm:$0x1]
    %v39 = vld [vmem:[%s1 + $0x5] sm:$0x1]
    %v40 = vld [vmem:[%s1 + $0x6] sm:$0x1]
    %v41 = vld [vmem:[%s1 + $0x7] sm:$0x1]
    %v50 = vlaneseq
    %v51 = vshrl.u32 %v50, 7
    %v52 = vsub.s32 0, %v51
    %v53 = vrot.slane %v34, %v52
    %v54 = vlaneseq
    %v55 = vshrl.u32 %v54, 7
    %v56 = vsub.s32 0, %v55
    %v57 = vrot.slane %v35, %v56
    %v58 = vlaneseq
    %v59 = vshrl.u32 %v58, 7
    %v60 = vsub.s32 0, %v59
    %v61 = vrot.slane %v36, %v60
    %v62 = vlaneseq
    %v63 = vshrl.u32 %v62, 7
    %v64 = vsub.s32 0, %v63
    %v65 = vrot.slane %v37, %v64
    %v66 = vlaneseq
    %v67 = vshrl.u32 %v66, 7
    %v68 = vsub.s32 0, %v67
    %v69 = vrot.slane %v38, %v68
    %v70 = vlaneseq
    %v71 = vshrl.u32 %v70, 7
    %v72 = vsub.s32 0, %v71
    %v73 = vrot.slane %v39, %v72
    %v74 = vlaneseq
    %v75 = vshrl.u32 %v74, 7
    %v76 = vsub.s32 0, %v75
    %v77 = vrot.slane %v40, %v76
    %v78 = vlaneseq
    %v79 = vshrl.u32 %v78, 7
    %v80 = vsub.s32 0, %v79
    %v81 = vrot.slane %v41, %v80
    %v90 = vadd.f32 %v26, %v53
    %v91 = vadd.f32 %v27, %v57
    %v92 = vadd.f32 %v28, %v61
    %v93 = vadd.f32 %v29, %v65
    %v94 = vadd.f32 %v30, %v69
    %v95 = vadd.f32 %v31, %v73
    %v96 = vadd.f32 %v32, %v77
    %v97 = vadd.f32 %v33, %v81
    %vm98 = vcmask 254976
    %99 = vst.msk [vmem:[#allocation5] sm:$0x3] %vm98, %v90
    %100 = vst.msk [vmem:[#allocation5 + $0x2] sm:$0x3] %vm98, %v91
    %101 = vst.msk [vmem:[#allocation5 + $0x4] sm:$0x3] %vm98, %v92
    %102 = vst.msk [vmem:[#allocation5 + $0x6] sm:$0x3] %vm98, %v93
    %103 = vst.msk [vmem:[#allocation5 + $0x8] sm:$0x3] %vm98, %v94
    %104 = vst.msk [vmem:[#allocation5 + $0xa] sm:$0x3] %vm98, %v95
    %105 = vst.msk [vmem:[#allocation5 + $0xc] sm:$0x3] %vm98, %v96
    %106 = vst.msk [vmem:[#allocation5 + $0xe] sm:$0x3] %vm98, %v97
    // Predicated region
    $region14: #{tpu_custom_call.1} parent=1 // pred_check
      _
    $region15: #{tpu_custom_call.1} parent=1 // pred_check_branch
      %108 = sbr.rel (0) target = $region17
    $region16: #{tpu_custom_call.1} parent=1 // pred_region
      %s110 = ssub.s32 256, 256
      %111 = vsyncadd [#allocation4], %s110
      %s112 = sshll.u32 [#allocation5], 4
      %s113 = int_to_ptr.vmem [resolvable:$true] %s112
      %118 = dma.vmem_to_hbm [thread:$0]  %s113, 256, %s2, [#allocation4], 32, 32, 2
    $region17: #{tpu_custom_call.1} parent=1 // pred_fallthru
      _
    // Predicated region
    $region18: #{tpu_custom_call.1} parent=1 // pred_check
      _
    $region19: #{tpu_custom_call.1} parent=1 // pred_check_branch
      %120 = sbr.rel (0) target = $region21
    $region20: #{tpu_custom_call.1} parent=1 // pred_region
      %121 = dma.done [#allocation4], 256
    $region21: #{tpu_custom_call.1} parent=1 // pred_fallthru
      _
    %122 = vsyncpa [#allocation3], 1
    %123 = vsyncpa [#allocation4], 1

</llo_original>
